<compile_context>
chip_gen: v5e
topology: v5e:2x2
jax: 0.10.0
libtpu: 0.0.40
codegen_flags: <defaults>
</compile_context>

<pallas_src>
import numpy as np
import jax
import jax.numpy as jnp
from jax.experimental import pallas as pl
from jax.experimental.pallas import tpu as pltpu

EPS = 1e-5
LANE = 128


def _softsign(x):
    return x / (1.0 + jnp.abs(x))


def _batchnorm(x, gamma, beta):
    # training-mode BatchNorm1d: batch mean, biased batch variance
    mean = jnp.mean(x, axis=0, keepdims=True)
    var = jnp.mean((x - mean) ** 2, axis=0, keepdims=True)
    return (x - mean) * jax.lax.rsqrt(var + EPS) * gamma + beta


# ---------------------------------------------------------------------------
# Kernel
# ---------------------------------------------------------------------------
def newsnet_kernel(emb_ref, w1f_ref, g1_ref, be1_ref,
                   w2_ref, g2_ref, be2_ref, w3_ref, b3_ref,
                   out_ref, acc_ref):
    k = pl.program_id(0)

    @pl.when(k == 0)
    def _():
        acc_ref[...] = jnp.zeros_like(acc_ref)

    # K-tiled fused (pool @ fc1) matmul: bf16 inputs, f32 MXU accumulation.
    acc_ref[...] += jnp.dot(emb_ref[...], w1f_ref[...],
                            preferred_element_type=jnp.float32)

    @pl.when(k == pl.num_programs(0) - 1)
    def _():
        # b1 dropped: constant pre-BN bias is cancelled by mean subtraction.
        h = _softsign(_batchnorm(acc_ref[...], g1_ref[...], be1_ref[...]))
        h = jnp.dot(h.astype(jnp.bfloat16), w2_ref[...],
                    preferred_element_type=jnp.float32)          # b2 dropped too
        h = _softsign(_batchnorm(h, g2_ref[...], be2_ref[...]))
        out_ref[...] = (jnp.dot(h.astype(jnp.bfloat16), w3_ref[...],
                                preferred_element_type=jnp.float32)
                        + b3_ref[...])                           # b3 kept (no BN after)


# ---------------------------------------------------------------------------
# Host-side helpers (offline weight preparation)
# ---------------------------------------------------------------------------
def make_pool_matrix(L, out_size):
    """Exact AdaptiveAvgPool1d as an (L, out_size) averaging matrix."""
    pool = np.zeros((L, out_size), dtype=np.float32)
    for i in range(out_size):
        s = (i * L) // out_size
        e = -((-(i + 1) * L) // out_size)          # ceil((i+1)*L/out)
        pool[s:e, i] = 1.0 / (e - s)
    return jnp.asarray(pool)


def _pad_to(x, axis, mult):
    pad = (-x.shape[axis]) % mult
    if pad == 0:
        return x
    widths = [(0, 0)] * x.ndim
    widths[axis] = (0, pad)
    return jnp.pad(x, widths)


def prepare_kernel_params(params, tk):
    """Exact offline transform: fold pool into fc1, drop pre-BN biases,
    zero-pad feature dims to lane width, cast matmul weights to bf16."""
    w1f = params["pool"] @ params["w1"]                       # (L, 4H) exact fold
    w1f = _pad_to(_pad_to(w1f, 1, LANE), 0, tk)
    return {
        "w1f": w1f.astype(jnp.bfloat16),
        "g1": _pad_to(params["g1"], 1, LANE),
        "be1": _pad_to(params["be1"], 1, LANE),
        "w2": _pad_to(_pad_to(params["w2"], 0, LANE), 1, LANE).astype(jnp.bfloat16),
        "g2": _pad_to(params["g2"], 1, LANE),
        "be2": _pad_to(params["be2"], 1, LANE),
        "w3": _pad_to(_pad_to(params["w3"], 0, LANE), 1, LANE).astype(jnp.bfloat16),
        "b3": _pad_to(params["b3"], 1, LANE).astype(jnp.float32),
    }


# ---------------------------------------------------------------------------
# Wrapper
# ---------------------------------------------------------------------------
def newsnet_forward(tokens, embedding, kp, *, num_classes, tk=256):
    # TODO(synk): move the embedding gather in-kernel via scalar-prefetched
    # token ids (pl.Element row gather) to skip one HBM round-trip of (B, L).
    emb = jnp.take(embedding, tokens, axis=0)                 # (B, ctx, D)
    B = emb.shape[0]
    emb = emb.reshape(B, -1)                                  # (B, L), row-major == torch.view
    emb = _pad_to(emb, 1, tk).astype(jnp.bfloat16)            # (B, L_pad)

    L_pad, H4p = kp["w1f"].shape
    Hp = kp["w2"].shape[1]
    Cp = kp["w3"].shape[1]
    n_k = L_pad // tk

    flops = 2 * B * (L_pad * H4p + H4p * Hp + Hp * Cp)
    bytes_accessed = (emb.size * 2 + kp["w1f"].size * 2 + kp["w2"].size * 2
                      + kp["w3"].size * 2
                      + 4 * (kp["b3"].size + kp["g1"].size + kp["be1"].size
                             + kp["g2"].size + kp["be2"].size)
                      + 4 * B * Cp)

    out = pl.pallas_call(
        newsnet_kernel,
        out_shape=jax.ShapeDtypeStruct((B, Cp), jnp.float32),
        grid_spec=pltpu.PrefetchScalarGridSpec(
            num_scalar_prefetch=0,
            grid=(n_k,),
            in_specs=[
                pl.BlockSpec((B, tk), lambda k: (0, k)),      # activations, K-tiled
                pl.BlockSpec((tk, H4p), lambda k: (k, 0)),    # fused fc1 weight, streamed
                pl.BlockSpec((1, H4p), lambda k: (0, 0)),     # bn1 gamma
                pl.BlockSpec((1, H4p), lambda k: (0, 0)),     # bn1 beta
                pl.BlockSpec((H4p, Hp), lambda k: (0, 0)),    # fc2 weight (resident)
                pl.BlockSpec((1, Hp), lambda k: (0, 0)),      # bn2 gamma
                pl.BlockSpec((1, Hp), lambda k: (0, 0)),      # bn2 beta
                pl.BlockSpec((Hp, Cp), lambda k: (0, 0)),     # fc3 weight
                pl.BlockSpec((1, Cp), lambda k: (0, 0)),      # fc3 bias
            ],
            out_specs=pl.BlockSpec((B, Cp), lambda k: (0, 0)),
            scratch_shapes=[pltpu.VMEM((B, H4p), jnp.float32)],
        ),
        compiler_params=pltpu.CompilerParams(
            dimension_semantics=("arbitrary",),
            vmem_limit_bytes=48 << 20,
        ),
        cost_estimate=pl.CostEstimate(
            flops=flops, transcendentals=0, bytes_accessed=bytes_accessed),
    )(emb, kp["w1f"], kp["g1"], kp["be1"],
      kp["w2"], kp["g2"], kp["be2"], kp["w3"], kp["b3"])

    return out[:, :num_classes]


# ---------------------------------------------------------------------------
# References
# ---------------------------------------------------------------------------
def newsnet_reference(tokens, params):
    """Pure-JAX f32 reference mirroring the PyTorch forward exactly."""
    embed = jnp.take(params["embedding"], tokens, axis=0)
    B = embed.shape[0]
    x = embed.reshape(B, -1)
    out = x @ params["pool"]
    out = out @ params["w1"] + params["b1"]
    out = _softsign(_batchnorm(out, params["g1"], params["be1"]))
    out = out @ params["w2"] + params["b2"]
    out = _softsign(_batchnorm(out, params["g2"], params["be2"]))
    return out @ params["w3"] + params["b3"]


def newsnet_reference_bf16(tokens, params):
    """Reference mirroring the kernel's numerics (fold + bf16 matmul inputs)."""
    embed = jnp.take(params["embedding"], tokens, axis=0)
    B = embed.shape[0]
    x = embed.reshape(B, -1).astype(jnp.bfloat16)
    w1f = (params["pool"] @ params["w1"]).astype(jnp.bfloat16)
    h = jnp.dot(x, w1f, preferred_element_type=jnp.float32)
    h = _softsign(_batchnorm(h, params["g1"], params["be1"]))
    h = jnp.dot(h.astype(jnp.bfloat16), params["w2"].astype(jnp.bfloat16),
                preferred_element_type=jnp.float32)
    h = _softsign(_batchnorm(h, params["g2"], params["be2"]))
    return (jnp.dot(h.astype(jnp.bfloat16), params["w3"].astype(jnp.bfloat16),
                    preferred_element_type=jnp.float32) + params["b3"])


# ---------------------------------------------------------------------------
# Init
# ---------------------------------------------------------------------------
def init_params(key, n_embed, d_embed, context_size, hidden_size, num_classes):
    H16, H4, H = 16 * hidden_size, 4 * hidden_size, hidden_size
    L = context_size * d_embed
    ks = jax.random.split(key, 8)

    def linear(kw, kb, fan_in, fan_out):
        bound = 1.0 / np.sqrt(fan_in)
        w = jax.random.uniform(kw, (fan_in, fan_out), jnp.float32, -bound, bound)
        b = jax.random.uniform(kb, (1, fan_out), jnp.float32, -bound, bound)
        return w, b

    w1, b1 = linear(ks[0], ks[1], H16, H4)
    w2, b2 = linear(ks[2], ks[3], H4, H)
    w3, b3 = linear(ks[4], ks[5], H, num_classes)

    return {
        "embedding": jax.random.normal(ks[6], (n_embed, d_embed), jnp.float32),
        "pool": make_pool_matrix(L, H16),
        "w1": w1, "b1": b1,
        "g1": jnp.ones((1, H4), jnp.float32), "be1": jnp.zeros((1, H4), jnp.float32),
        "w2": w2, "b2": b2,
        "g2": jnp.ones((1, H), jnp.float32), "be2": jnp.zeros((1, H), jnp.float32),
        "w3": w3, "b3": b3,
    }


if __name__ == "__main__":
    # small shapes consistent with the module's structure
    n_embed, d_embed = 50, 16
    context_size = 32          # stands in for 1000
    hidden_size = 8            # stands in for 300 -> 16H = 128, 4H = 32
    num_classes = 7
    B = 8
    TK = 256                   # L = 512 -> 2 K-tiles: exercises the accumulator path

    key = jax.random.PRNGKey(0)
    kkey, xkey = jax.random.split(key)
    params = init_params(kkey, n_embed, d_embed, context_size, hidden_size, num_classes)
    tokens = jax.random.randint(xkey, (B, context_size), 0, n_embed, dtype=jnp.int32)

    kparams = prepare_kernel_params(params, TK)

    out = newsnet_forward(tokens, params["embedding"], kparams,
                          num_classes=num_classes, tk=TK)
    out = jax.block_until_ready(out)
    assert out.shape == (B, num_classes)

    # exact-numerics check (same bf16/fold math as the kernel)
    ref_bf16 = jax.block_until_ready(newsnet_reference_bf16(tokens, params))
    err_bf16 = float(jnp.max(jnp.abs(out - ref_bf16)))
    assert err_bf16 < 2e-3, f"kernel vs bf16 reference mismatch: {err_bf16}"

    # f32 module-faithful check (loose: bf16 matmul inputs vs f32 path)
    ref_f32 = jax.block_until_ready(newsnet_reference(tokens, params))
    err_f32 = float(jnp.max(jnp.abs(out - ref_f32)))
    assert err_f32 < 5e-2, f"kernel vs f32 reference mismatch: {err_f32}"

    print("KERNEL_OK")
</pallas_src>

<mosaic_0001>
module attributes {stable_mosaic.version = 11 : i64} {
  func.func @newsnet_kernel(%arg0: i32, %arg1: memref<8x256xbf16, #tpu.memory_space<vmem>>, %arg2: memref<256x128xbf16, #tpu.memory_space<vmem>>, %arg3: memref<1x128xf32, #tpu.memory_space<vmem>>, %arg4: memref<1x128xf32, #tpu.memory_space<vmem>>, %arg5: memref<128x128xbf16, #tpu.memory_space<vmem>>, %arg6: memref<1x128xf32, #tpu.memory_space<vmem>>, %arg7: memref<1x128xf32, #tpu.memory_space<vmem>>, %arg8: memref<128x128xbf16, #tpu.memory_space<vmem>>, %arg9: memref<1x128xf32, #tpu.memory_space<vmem>>, %arg10: memref<8x128xf32, #tpu.memory_space<vmem>>, %arg11: memref<8x128xf32, #tpu.memory_space<vmem>>) attributes {dimension_semantics = [#tpu.dimension_semantics<arbitrary>], iteration_bounds = array<i64: 2>, scalar_prefetch = 0 : i64, scratch_operands = 1 : i64, tpu.core_type = #tpu.core_type<tc>, window_params = [{transform_indices = @transform_0, window_bounds = array<i64: 8, 256>}, {transform_indices = @transform_1, window_bounds = array<i64: 256, 128>}, {pipeline_mode = #tpu.pipeline_mode<synchronous>, transform_indices = @transform_2, window_bounds = array<i64: 1, 128>}, {pipeline_mode = #tpu.pipeline_mode<synchronous>, transform_indices = @transform_3, window_bounds = array<i64: 1, 128>}, {pipeline_mode = #tpu.pipeline_mode<synchronous>, transform_indices = @transform_4, window_bounds = array<i64: 128, 128>}, {pipeline_mode = #tpu.pipeline_mode<synchronous>, transform_indices = @transform_5, window_bounds = array<i64: 1, 128>}, {pipeline_mode = #tpu.pipeline_mode<synchronous>, transform_indices = @transform_6, window_bounds = array<i64: 1, 128>}, {pipeline_mode = #tpu.pipeline_mode<synchronous>, transform_indices = @transform_7, window_bounds = array<i64: 128, 128>}, {pipeline_mode = #tpu.pipeline_mode<synchronous>, transform_indices = @transform_8, window_bounds = array<i64: 1, 128>}, {pipeline_mode = #tpu.pipeline_mode<synchronous>, transform_indices = @transform_9, window_bounds = array<i64: 8, 128>}]} {
    %c0_i32 = arith.constant 0 : i32
    %0 = arith.cmpi eq, %arg0, %c0_i32 : i32
    %1 = arith.extui %0 : i1 to i32
    %c0_i32_0 = arith.constant 0 : i32
    %2 = arith.cmpi ne, %1, %c0_i32_0 : i32
    scf.if %2 {
      %cst_9 = arith.constant 0.000000e+00 : f32
      %12 = vector.broadcast %cst_9 : f32 to vector<8x128xf32>
      %c0_10 = arith.constant 0 : index
      %c0_11 = arith.constant 0 : index
      %13 = vector.load %arg11[%c0_10, %c0_11] : memref<8x128xf32, #tpu.memory_space<vmem>>, vector<8x128xf32>
      tpu.vector_store %arg11[%c0_10, %c0_11], %12 {strides = array<i32>} : memref<8x128xf32, #tpu.memory_space<vmem>>, vector<8x128xf32>,
    } else {
    }
    %c0 = arith.constant 0 : index
    %c0_1 = arith.constant 0 : index
    %3 = vector.load %arg11[%c0, %c0_1] : memref<8x128xf32, #tpu.memory_space<vmem>>, vector<8x128xf32>
    %c0_2 = arith.constant 0 : index
    %c0_3 = arith.constant 0 : index
    %4 = vector.load %arg1[%c0_2, %c0_3] : memref<8x256xbf16, #tpu.memory_space<vmem>>, vector<8x256xbf16>
    %c0_4 = arith.constant 0 : index
    %c0_5 = arith.constant 0 : index
    %5 = vector.load %arg2[%c0_4, %c0_5] : memref<256x128xbf16, #tpu.memory_space<vmem>>, vector<256x128xbf16>
    %cst = arith.constant dense<0.000000e+00> : vector<8x128xf32>
    %6 = tpu.matmul %4, %5, %cst {dimension_numbers = #tpu.dot_dimension_numbers<[1], [0], [0], [1], [0, 0, 1, 1], [], []>} : vector<8x256xbf16>, vector<256x128xbf16>, vector<8x128xf32> -> vector<8x128xf32>
    %7 = arith.addf %3, %6 : vector<8x128xf32>
    %c0_6 = arith.constant 0 : index
    %c0_7 = arith.constant 0 : index
    %8 = vector.load %arg11[%c0_6, %c0_7] : memref<8x128xf32, #tpu.memory_space<vmem>>, vector<8x128xf32>
    tpu.vector_store %arg11[%c0_6, %c0_7], %7 {strides = array<i32>} : memref<8x128xf32, #tpu.memory_space<vmem>>, vector<8x128xf32>,
    %c1_i32 = arith.constant 1 : i32
    %9 = arith.cmpi eq, %arg0, %c1_i32 : i32
    %10 = arith.extui %9 : i1 to i32
    %c0_i32_8 = arith.constant 0 : i32
    %11 = arith.cmpi ne, %10, %c0_i32_8 : i32
    scf.if %11 {
      %c0_9 = arith.constant 0 : index
      %c0_10 = arith.constant 0 : index
      %12 = vector.load %arg11[%c0_9, %c0_10] : memref<8x128xf32, #tpu.memory_space<vmem>>, vector<8x128xf32>
      %c0_11 = arith.constant 0 : index
      %c0_12 = arith.constant 0 : index
      %13 = vector.load %arg3[%c0_11, %c0_12] : memref<1x128xf32, #tpu.memory_space<vmem>>, vector<1x128xf32>
      %c0_13 = arith.constant 0 : index
      %c0_14 = arith.constant 0 : index
      %14 = vector.load %arg4[%c0_13, %c0_14] : memref<1x128xf32, #tpu.memory_space<vmem>>, vector<1x128xf32>
      %cst_15 = arith.constant dense<0.000000e+00> : vector<128xf32>
      %15 = vector.multi_reduction <add>, %12, %cst_15 [0] : vector<8x128xf32> to vector<128xf32>
      %16 = vector.shape_cast %15 : vector<128xf32> to vector<1x128xf32>
      %cst_16 = arith.constant 8.000000e+00 : f32
      %17 = vector.broadcast %cst_16 : f32 to vector<1x128xf32>
      %18 = arith.divf %16, %17 : vector<1x128xf32>
      %19 = vector.broadcast %18 : vector<1x128xf32> to vector<8x128xf32>
      %20 = arith.subf %12, %19 : vector<8x128xf32>
      %21 = arith.mulf %20, %20 : vector<8x128xf32>
      %cst_17 = arith.constant dense<0.000000e+00> : vector<128xf32>
      %22 = vector.multi_reduction <add>, %21, %cst_17 [0] : vector<8x128xf32> to vector<128xf32>
      %23 = vector.shape_cast %22 : vector<128xf32> to vector<1x128xf32>
      %cst_18 = arith.constant 8.000000e+00 : f32
      %24 = vector.broadcast %cst_18 : f32 to vector<1x128xf32>
      %25 = arith.divf %23, %24 : vector<1x128xf32>
      %26 = vector.broadcast %18 : vector<1x128xf32> to vector<8x128xf32>
      %27 = arith.subf %12, %26 : vector<8x128xf32>
      %cst_19 = arith.constant 9.99999974E-6 : f32
      %28 = vector.broadcast %cst_19 : f32 to vector<1x128xf32>
      %29 = arith.addf %25, %28 : vector<1x128xf32>
      %30 = math.rsqrt %29 : vector<1x128xf32>
      %31 = vector.broadcast %30 : vector<1x128xf32> to vector<8x128xf32>
      %32 = arith.mulf %27, %31 : vector<8x128xf32>
      %33 = vector.broadcast %13 : vector<1x128xf32> to vector<8x128xf32>
      %34 = arith.mulf %32, %33 : vector<8x128xf32>
      %35 = vector.broadcast %14 : vector<1x128xf32> to vector<8x128xf32>
      %36 = arith.addf %34, %35 : vector<8x128xf32>
      %37 = math.absf %36 : vector<8x128xf32>
      %cst_20 = arith.constant 1.000000e+00 : f32
      %38 = vector.broadcast %cst_20 : f32 to vector<8x128xf32>
      %39 = arith.addf %38, %37 : vector<8x128xf32>
      %40 = arith.divf %36, %39 : vector<8x128xf32>
      %41 = arith.truncf %40 : vector<8x128xf32> to vector<8x128xbf16>
      %c0_21 = arith.constant 0 : index
      %c0_22 = arith.constant 0 : index
      %42 = vector.load %arg5[%c0_21, %c0_22] : memref<128x128xbf16, #tpu.memory_space<vmem>>, vector<128x128xbf16>
      %cst_23 = arith.constant dense<0.000000e+00> : vector<8x128xf32>
      %43 = tpu.matmul %41, %42, %cst_23 {dimension_numbers = #tpu.dot_dimension_numbers<[1], [0], [0], [1], [0, 0, 1, 1], [], []>} : vector<8x128xbf16>, vector<128x128xbf16>, vector<8x128xf32> -> vector<8x128xf32>
      %c0_24 = arith.constant 0 : index
      %c0_25 = arith.constant 0 : index
      %44 = vector.load %arg6[%c0_24, %c0_25] : memref<1x128xf32, #tpu.memory_space<vmem>>, vector<1x128xf32>
      %c0_26 = arith.constant 0 : index
      %c0_27 = arith.constant 0 : index
      %45 = vector.load %arg7[%c0_26, %c0_27] : memref<1x128xf32, #tpu.memory_space<vmem>>, vector<1x128xf32>
      %cst_28 = arith.constant dense<0.000000e+00> : vector<128xf32>
      %46 = vector.multi_reduction <add>, %43, %cst_28 [0] : vector<8x128xf32> to vector<128xf32>
      %47 = vector.shape_cast %46 : vector<128xf32> to vector<1x128xf32>
      %cst_29 = arith.constant 8.000000e+00 : f32
      %48 = vector.broadcast %cst_29 : f32 to vector<1x128xf32>
      %49 = arith.divf %47, %48 : vector<1x128xf32>
      %50 = vector.broadcast %49 : vector<1x128xf32> to vector<8x128xf32>
      %51 = arith.subf %43, %50 : vector<8x128xf32>
      %52 = arith.mulf %51, %51 : vector<8x128xf32>
      %cst_30 = arith.constant dense<0.000000e+00> : vector<128xf32>
      %53 = vector.multi_reduction <add>, %52, %cst_30 [0] : vector<8x128xf32> to vector<128xf32>
      %54 = vector.shape_cast %53 : vector<128xf32> to vector<1x128xf32>
      %cst_31 = arith.constant 8.000000e+00 : f32
      %55 = vector.broadcast %cst_31 : f32 to vector<1x128xf32>
      %56 = arith.divf %54, %55 : vector<1x128xf32>
      %57 = vector.broadcast %49 : vector<1x128xf32> to vector<8x128xf32>
      %58 = arith.subf %43, %57 : vector<8x128xf32>
      %cst_32 = arith.constant 9.99999974E-6 : f32
      %59 = vector.broadcast %cst_32 : f32 to vector<1x128xf32>
      %60 = arith.addf %56, %59 : vector<1x128xf32>
      %61 = math.rsqrt %60 : vector<1x128xf32>
      %62 = vector.broadcast %61 : vector<1x128xf32> to vector<8x128xf32>
      %63 = arith.mulf %58, %62 : vector<8x128xf32>
      %64 = vector.broadcast %44 : vector<1x128xf32> to vector<8x128xf32>
      %65 = arith.mulf %63, %64 : vector<8x128xf32>
      %66 = vector.broadcast %45 : vector<1x128xf32> to vector<8x128xf32>
      %67 = arith.addf %65, %66 : vector<8x128xf32>
      %68 = math.absf %67 : vector<8x128xf32>
      %cst_33 = arith.constant 1.000000e+00 : f32
      %69 = vector.broadcast %cst_33 : f32 to vector<8x128xf32>
      %70 = arith.addf %69, %68 : vector<8x128xf32>
      %71 = arith.divf %67, %70 : vector<8x128xf32>
      %72 = arith.truncf %71 : vector<8x128xf32> to vector<8x128xbf16>
      %c0_34 = arith.constant 0 : index
      %c0_35 = arith.constant 0 : index
      %73 = vector.load %arg8[%c0_34, %c0_35] : memref<128x128xbf16, #tpu.memory_space<vmem>>, vector<128x128xbf16>
      %cst_36 = arith.constant dense<0.000000e+00> : vector<8x128xf32>
      %74 = tpu.matmul %72, %73, %cst_36 {dimension_numbers = #tpu.dot_dimension_numbers<[1], [0], [0], [1], [0, 0, 1, 1], [], []>} : vector<8x128xbf16>, vector<128x128xbf16>, vector<8x128xf32> -> vector<8x128xf32>
      %c0_37 = arith.constant 0 : index
      %c0_38 = arith.constant 0 : index
      %75 = vector.load %arg9[%c0_37, %c0_38] : memref<1x128xf32, #tpu.memory_space<vmem>>, vector<1x128xf32>
      %76 = vector.broadcast %75 : vector<1x128xf32> to vector<8x128xf32>
      %77 = arith.addf %74, %76 : vector<8x128xf32>
      %c0_39 = arith.constant 0 : index
      %c0_40 = arith.constant 0 : index
      %78 = vector.load %arg10[%c0_39, %c0_40] : memref<8x128xf32, #tpu.memory_space<vmem>>, vector<8x128xf32>
      tpu.vector_store %arg10[%c0_39, %c0_40], %77 {strides = array<i32>} : memref<8x128xf32, #tpu.memory_space<vmem>>, vector<8x128xf32>,
    } else {
    }
    return
  }
  func.func @transform_0(%arg0: i32) -> (i32, i32) {
    %c0_i32 = arith.constant 0 : i32
    %c0_i32_0 = arith.constant 0 : i32
    return %c0_i32, %arg0 : i32, i32
  }
  func.func @transform_1(%arg0: i32) -> (i32, i32) {
    %c0_i32 = arith.constant 0 : i32
    %c0_i32_0 = arith.constant 0 : i32
    return %arg0, %c0_i32 : i32, i32
  }
  func.func @transform_2(%arg0: i32) -> (i32, i32) {
    %c0_i32 = arith.constant 0 : i32
    %c0_i32_0 = arith.constant 0 : i32
    %c0_i32_1 = arith.constant 0 : i32
    return %c0_i32, %c0_i32_0 : i32, i32
  }
  func.func @transform_3(%arg0: i32) -> (i32, i32) {
    %c0_i32 = arith.constant 0 : i32
    %c0_i32_0 = arith.constant 0 : i32
    %c0_i32_1 = arith.constant 0 : i32
    return %c0_i32, %c0_i32_0 : i32, i32
  }
  func.func @transform_4(%arg0: i32) -> (i32, i32) {
    %c0_i32 = arith.constant 0 : i32
    %c0_i32_0 = arith.constant 0 : i32
    %c0_i32_1 = arith.constant 0 : i32
    return %c0_i32, %c0_i32_0 : i32, i32
  }
  func.func @transform_5(%arg0: i32) -> (i32, i32) {
    %c0_i32 = arith.constant 0 : i32
    %c0_i32_0 = arith.constant 0 : i32
    %c0_i32_1 = arith.constant 0 : i32
    return %c0_i32, %c0_i32_0 : i32, i32
  }
  func.func @transform_6(%arg0: i32) -> (i32, i32) {
    %c0_i32 = arith.constant 0 : i32
    %c0_i32_0 = arith.constant 0 : i32
    %c0_i32_1 = arith.constant 0 : i32
    return %c0_i32, %c0_i32_0 : i32, i32
  }
  func.func @transform_7(%arg0: i32) -> (i32, i32) {
    %c0_i32 = arith.constant 0 : i32
    %c0_i32_0 = arith.constant 0 : i32
    %c0_i32_1 = arith.constant 0 : i32
    return %c0_i32, %c0_i32_0 : i32, i32
  }
  func.func @transform_8(%arg0: i32) -> (i32, i32) {
    %c0_i32 = arith.constant 0 : i32
    %c0_i32_0 = arith.constant 0 : i32
    %c0_i32_1 = arith.constant 0 : i32
    return %c0_i32, %c0_i32_0 : i32, i32
  }
  func.func @transform_9(%arg0: i32) -> (i32, i32) {
    %c0_i32 = arith.constant 0 : i32
    %c0_i32_0 = arith.constant 0 : i32
    %c0_i32_1 = arith.constant 0 : i32
    return %c0_i32, %c0_i32_0 : i32, i32
  }
}

</mosaic_0001>

<llo_original>
// kernel: tpu_custom_call.1
$region0: #{tpu_custom_call.1}
  #allocation0 [shape = 'u32[]', space=smem, size = 0x4, offset = 0x4, fixed_abs, tag = 'smem constant byte address 0x4 - core index']
  #allocation1 [shape = 'u32[72,128]{1,0:T(1,128)}', space=vmem, size = 0x9000, scoped, tag = 'internal scratch']
  #allocation2 [shape = 'f32[8,128]{1,0:T(8,128)}', space=vmem, size = 0x1000, scoped, tag = 'scratch operand']
  %s0 = inlined_call_operand.hbm [shape: bf16[8,512], index: 0, kind: input, shape index: {}]
  %s1 = inlined_call_operand.hbm [shape: bf16[512,128], index: 1, kind: input, shape index: {}]
  %s2 = inlined_call_operand.vmem [shape: f32[1,128], index: 2, kind: input, shape index: {}]
  %s3 = inlined_call_operand.vmem [shape: f32[1,128], index: 3, kind: input, shape index: {}]
  %s4 = inlined_call_operand.hbm [shape: bf16[128,128], index: 4, kind: input, shape index: {}]
  %s5 = inlined_call_operand.vmem [shape: f32[1,128], index: 5, kind: input, shape index: {}]
  %s6 = inlined_call_operand.vmem [shape: f32[1,128], index: 6, kind: input, shape index: {}]
  %s7 = inlined_call_operand.hbm [shape: bf16[128,128], index: 7, kind: input, shape index: {}]
  %s8 = inlined_call_operand.vmem [shape: f32[1,128], index: 8, kind: input, shape index: {}]
  %s9 = inlined_call_operand.hbm [shape: f32[8,128], index: 9, kind: output, shape index: {}]
  %s10 = sld [smem:[#allocation0]]
  $region93: #{tpu_custom_call.1} parent=0
    _
  %s12 = ssub.s32 1, %s10
  %s13 = scalar_select 0, %s12, %s10
  $region1: #{tpu_custom_call.1} parent=0
    #allocation3 [shape = 'u8[8192]{0}', space=vmem, size = 0x2000, scoped, tag = 'input window, operand 0']
    #allocation4 [shape = 's32[2]{0}', space=sflag, size = 0x8, scoped, tag = 'scoped memory for tpu_custom_call.1']
    #allocation5 [shape = 's32[2]{0}', space=sflag, size = 0x8, scoped, tag = 'scoped memory for tpu_custom_call.1']
    #allocation6 [shape = 'u8[131072]{0}', space=vmem, size = 0x20000, scoped, tag = 'input window, operand 1']
    #allocation7 [shape = 's32[2]{0}', space=sflag, size = 0x8, scoped, tag = 'scoped memory for tpu_custom_call.1']
    #allocation8 [shape = 'u8[32768]{0}', space=vmem, size = 0x8000, scoped, tag = 'input window, operand 4, single buffered']
    #allocation9 [shape = 'u8[32768]{0}', space=vmem, size = 0x8000, scoped, tag = 'input window, operand 7, single buffered']
    #allocation10 [shape = 's32[1]{0}', space=sflag, size = 0x4, scoped, tag = 'scoped memory for tpu_custom_call.1']
    #allocation11 [shape = 'u8[4096]{0}', space=vmem, size = 0x1000, scoped, tag = 'output window, operand 0, single buffered']
    %14 = vsyncpa [#allocation4], 0
    %s15 = scalar_lea.sflag [#allocation4], 1
    %16 = vsyncpa %s15, 0
    %17 = vsyncpa [#allocation7], 0
    %s18 = scalar_lea.sflag [#allocation7], 1
    %19 = vsyncpa %s18, 0
    %20 = vsyncpa [#allocation10], 0
    %21 = vsyncpa [#allocation5], 0
    loop: start=0, step=1, limit=4
    $region2: #{tpu_custom_call.1} parent=1 // loop_pre_header
      _
    $region3: #{tpu_custom_call.1} parent=1 // loop_header
      %s23 = sphi 0, %s27
      %p24 = scmp.ge.s32.totalorder %s23, 4
      %s33 = sphi 0, %s35
      %s36 = sphi 0, %s33
      %s37 = sphi 0, %s36
      %s53 = sphi 0, %s37
      %s59 = sphi 0, %s61
      %s62 = sphi 0, %s59
      %s63 = sphi 0, %s62
      %s79 = sphi 0, %s63
      %s83 = sphi 0, %s83
      %s85 = sphi 0, %s83
      %s86 = sphi 0, %s85
      %s100 = sphi 0, %s86
      %s104 = sphi 0, %s104
      %s106 = sphi 0, %s104
      %s107 = sphi 0, %s106
      %s121 = sphi 0, %s107
      %s125 = sphi 0, %s125
      %s127 = sphi 0, %s125
      %s128 = sphi 0, %s127
      %s142 = sphi 0, %s128
      %s146 = sphi 0, %s146
      %s148 = sphi 0, %s146
      %s149 = sphi 0, %s148
      %s163 = sphi 0, %s149
      %s167 = sphi 0, %s167
      %s169 = sphi 0, %s167
      %s170 = sphi 0, %s169
      %s184 = sphi 0, %s170
      %s188 = sphi 0, %s188
      %s190 = sphi 0, %s188
      %s191 = sphi 0, %s190
      %s205 = sphi 0, %s191
      %s209 = sphi 0, %s209
      %s211 = sphi 0, %s209
      %s212 = sphi 0, %s211
      %s226 = sphi 0, %s212
      %s230 = sphi 0, %s230
      %s232 = sphi 0, %s230
      %s233 = sphi 0, %s232
      %s247 = sphi 0, %s233
    $region4: #{tpu_custom_call.1} parent=1 // loop_header_branch
      %26 = sbr.rel (%p24) target = $region8
    $region5: #{tpu_custom_call.1} parent=1 // loop_body
      %s28 = ssub.s32 %s23, 1
      %s29 = ssub.s32 %s23, 2
      %s30 = sadd.s32 %s23, 1
      %s31 = ssub.s32 %s23, %s30
      %p32 = scmp.eq.s32.totalorder %s31, 0
      %s34 = sadd.s32 %s33, 1
      %s35 = scalar_select %p32, %s33, %s34
      %p38 = pneg %p32
      %p39 = scmp.eq.s32.totalorder %s23, 1
      %p40 = por %p38, %p39
      %p41 = scmp.ne.s32.totalorder %s33, %s36
      %p42 = scmp.eq.s32.totalorder %s23, 0
      %p43 = por %p41, %p42
      %p44 = scmp.ne.s32.totalorder %s33, %s36
      %p45 = scmp.eq.s32.totalorder %s28, 1
      %p46 = por %p44, %p45
      %p47 = scmp.ne.s32.totalorder %s36, %s37
      %p48 = scmp.eq.s32.totalorder %s28, 0
      %p49 = por %p47, %p48
      %p50 = scmp.ne.s32.totalorder %s36, %s37
      %p51 = scmp.eq.s32.totalorder %s29, 1
      %p52 = por %p50, %p51
      %p54 = scmp.ne.s32.totalorder %s37, %s53
      %p55 = scmp.eq.s32.totalorder %s29, 0
      %p56 = por %p54, %p55
      %s57 = ssub.s32 %s23, %s30
      %p58 = scmp.eq.s32.totalorder %s57, 0
      %s60 = sadd.s32 %s59, 1
      %s61 = scalar_select %p58, %s59, %s60
      %p64 = pneg %p58
      %p65 = scmp.eq.s32.totalorder %s23, 1
      %p66 = por %p64, %p65
      %p67 = scmp.ne.s32.totalorder %s59, %s62
      %p68 = scmp.eq.s32.totalorder %s23, 0
      %p69 = por %p67, %p68
      %p70 = scmp.ne.s32.totalorder %s59, %s62
      %p71 = scmp.eq.s32.totalorder %s28, 1
      %p72 = por %p70, %p71
      %p73 = scmp.ne.s32.totalorder %s62, %s63
      %p74 = scmp.eq.s32.totalorder %s28, 0
      %p75 = por %p73, %p74
      %p76 = scmp.ne.s32.totalorder %s62, %s63
      %p77 = scmp.eq.s32.totalorder %s29, 1
      %p78 = por %p76, %p77
      %p80 = scmp.ne.s32.totalorder %s63, %s79
      %p81 = scmp.eq.s32.totalorder %s29, 0
      %p82 = por %p80, %p81
      %s84 = sadd.s32 %s83, 1
      %p87 = scmp.eq.s32.totalorder %s23, 1
      %p88 = scmp.ne.s32.totalorder %s83, %s85
      %p89 = scmp.eq.s32.totalorder %s23, 0
      %p90 = por %p88, %p89
      %p91 = scmp.ne.s32.totalorder %s83, %s85
      %p92 = scmp.eq.s32.totalorder %s28, 1
      %p93 = por %p91, %p92
      %p94 = scmp.ne.s32.totalorder %s85, %s86
      %p95 = scmp.eq.s32.totalorder %s28, 0
      %p96 = por %p94, %p95
      %p97 = scmp.ne.s32.totalorder %s85, %s86
      %p98 = scmp.eq.s32.totalorder %s29, 1
      %p99 = por %p97, %p98
      %p101 = scmp.ne.s32.totalorder %s86, %s100
      %p102 = scmp.eq.s32.totalorder %s29, 0
      %p103 = por %p101, %p102
      %s105 = sadd.s32 %s104, 1
      %p108 = scmp.eq.s32.totalorder %s23, 1
      %p109 = scmp.ne.s32.totalorder %s104, %s106
      %p110 = scmp.eq.s32.totalorder %s23, 0
      %p111 = por %p109, %p110
      %p112 = scmp.ne.s32.totalorder %s104, %s106
      %p113 = scmp.eq.s32.totalorder %s28, 1
      %p114 = por %p112, %p113
      %p115 = scmp.ne.s32.totalorder %s106, %s107
      %p116 = scmp.eq.s32.totalorder %s28, 0
      %p117 = por %p115, %p116
      %p118 = scmp.ne.s32.totalorder %s106, %s107
      %p119 = scmp.eq.s32.totalorder %s29, 1
      %p120 = por %p118, %p119
      %p122 = scmp.ne.s32.totalorder %s107, %s121
      %p123 = scmp.eq.s32.totalorder %s29, 0
      %p124 = por %p122, %p123
      %s126 = sadd.s32 %s125, 1
      %p129 = scmp.eq.s32.totalorder %s23, 1
      %p130 = scmp.ne.s32.totalorder %s125, %s127
      %p131 = scmp.eq.s32.totalorder %s23, 0
      %p132 = por %p130, %p131
      %p133 = scmp.ne.s32.totalorder %s125, %s127
      %p134 = scmp.eq.s32.totalorder %s28, 1
      %p135 = por %p133, %p134
      %p136 = scmp.ne.s32.totalorder %s127, %s128
      %p137 = scmp.eq.s32.totalorder %s28, 0
      %p138 = por %p136, %p137
      %p139 = scmp.ne.s32.totalorder %s127, %s128
      %p140 = scmp.eq.s32.totalorder %s29, 1
      %p141 = por %p139, %p140
      %p143 = scmp.ne.s32.totalorder %s128, %s142
      %p144 = scmp.eq.s32.totalorder %s29, 0
      %p145 = por %p143, %p144
      %s147 = sadd.s32 %s146, 1
      %p150 = scmp.eq.s32.totalorder %s23, 1
      %p151 = scmp.ne.s32.totalorder %s146, %s148
      %p152 = scmp.eq.s32.totalorder %s23, 0
      %p153 = por %p151, %p152
      %p154 = scmp.ne.s32.totalorder %s146, %s148
      %p155 = scmp.eq.s32.totalorder %s28, 1
      %p156 = por %p154, %p155
      %p157 = scmp.ne.s32.totalorder %s148, %s149
      %p158 = scmp.eq.s32.totalorder %s28, 0
      %p159 = por %p157, %p158
      %p160 = scmp.ne.s32.totalorder %s148, %s149
      %p161 = scmp.eq.s32.totalorder %s29, 1
      %p162 = por %p160, %p161
      %p164 = scmp.ne.s32.totalorder %s149, %s163
      %p165 = scmp.eq.s32.totalorder %s29, 0
      %p166 = por %p164, %p165
      %s168 = sadd.s32 %s167, 1
      %p171 = scmp.eq.s32.totalorder %s23, 1
      %p172 = scmp.ne.s32.totalorder %s167, %s169
      %p173 = scmp.eq.s32.totalorder %s23, 0
      %p174 = por %p172, %p173
      %p175 = scmp.ne.s32.totalorder %s167, %s169
      %p176 = scmp.eq.s32.totalorder %s28, 1
      %p177 = por %p175, %p176
      %p178 = scmp.ne.s32.totalorder %s169, %s170
      %p179 = scmp.eq.s32.totalorder %s28, 0
      %p180 = por %p178, %p179
      %p181 = scmp.ne.s32.totalorder %s169, %s170
      %p182 = scmp.eq.s32.totalorder %s29, 1
      %p183 = por %p181, %p182
      %p185 = scmp.ne.s32.totalorder %s170, %s184
      %p186 = scmp.eq.s32.totalorder %s29, 0
      %p187 = por %p185, %p186
      %s189 = sadd.s32 %s188, 1
      %p192 = scmp.eq.s32.totalorder %s23, 1
      %p193 = scmp.ne.s32.totalorder %s188, %s190
      %p194 = scmp.eq.s32.totalorder %s23, 0
      %p195 = por %p193, %p194
      %p196 = scmp.ne.s32.totalorder %s188, %s190
      %p197 = scmp.eq.s32.totalorder %s28, 1
      %p198 = por %p196, %p197
      %p199 = scmp.ne.s32.totalorder %s190, %s191
      %p200 = scmp.eq.s32.totalorder %s28, 0
      %p201 = por %p199, %p200
      %p202 = scmp.ne.s32.totalorder %s190, %s191
      %p203 = scmp.eq.s32.totalorder %s29, 1
      %p204 = por %p202, %p203
      %p206 = scmp.ne.s32.totalorder %s191, %s205
      %p207 = scmp.eq.s32.totalorder %s29, 0
      %p208 = por %p206, %p207
      %s210 = sadd.s32 %s209, 1
      %p213 = scmp.eq.s32.totalorder %s23, 1
      %p214 = scmp.ne.s32.totalorder %s209, %s211
      %p215 = scmp.eq.s32.totalorder %s23, 0
      %p216 = por %p214, %p215
      %p217 = scmp.ne.s32.totalorder %s209, %s211
      %p218 = scmp.eq.s32.totalorder %s28, 1
      %p219 = por %p217, %p218
      %p220 = scmp.ne.s32.totalorder %s211, %s212
      %p221 = scmp.eq.s32.totalorder %s28, 0
      %p222 = por %p220, %p221
      %p223 = scmp.ne.s32.totalorder %s211, %s212
      %p224 = scmp.eq.s32.totalorder %s29, 1
      %p225 = por %p223, %p224
      %p227 = scmp.ne.s32.totalorder %s212, %s226
      %p228 = scmp.eq.s32.totalorder %s29, 0
      %p229 = por %p227, %p228
      %s231 = sadd.s32 %s230, 1
      %p234 = scmp.eq.s32.totalorder %s23, 1
      %p235 = scmp.ne.s32.totalorder %s230, %s232
      %p236 = scmp.eq.s32.totalorder %s23, 0
      %p237 = por %p235, %p236
      %p238 = scmp.ne.s32.totalorder %s230, %s232
      %p239 = scmp.eq.s32.totalorder %s28, 1
      %p240 = por %p238, %p239
      %p241 = scmp.ne.s32.totalorder %s232, %s233
      %p242 = scmp.eq.s32.totalorder %s28, 0
      %p243 = por %p241, %p242
      %p244 = scmp.ne.s32.totalorder %s232, %s233
      %p245 = scmp.eq.s32.totalorder %s29, 1
      %p246 = por %p244, %p245
      %p248 = scmp.ne.s32.totalorder %s233, %s247
      %p249 = scmp.eq.s32.totalorder %s29, 0
      %p250 = por %p248, %p249
      %p251 = scmp.le.s32.totalorder 1, %s23
      %p252 = scmp.lt.s32.totalorder %s23, 3
      %p253 = pnand %p251, %p252
      %p254 = pneg %p253
      // Predicated region
      $region9: #{tpu_custom_call.1} parent=5 // pred_check
        _
      $region10: #{tpu_custom_call.1} parent=5 // pred_check_branch
        %256 = sbr.rel (%p253) target = $region12
      $region11: #{tpu_custom_call.1} parent=5 // pred_region
        %s257 = ssub.s32 %s23, 1
        // Predicated region
        $region13: #{tpu_custom_call.1} parent=11 // pred_check
          %p258 = pneg %p96
        $region14: #{tpu_custom_call.1} parent=11 // pred_check_branch
          %260 = sbr.rel (%p258) target = $region16
        $region15: #{tpu_custom_call.1} parent=11 // pred_region
          _
        $region16: #{tpu_custom_call.1} parent=11 // pred_fallthru
          _
        // Predicated region
        $region17: #{tpu_custom_call.1} parent=11 // pred_check
          %p261 = pneg %p117
        $region18: #{tpu_custom_call.1} parent=11 // pred_check_branch
          %263 = sbr.rel (%p261) target = $region20
        $region19: #{tpu_custom_call.1} parent=11 // pred_region
          _
        $region20: #{tpu_custom_call.1} parent=11 // pred_fallthru
          _
        // Predicated region
        $region21: #{tpu_custom_call.1} parent=11 // pred_check
          %p264 = pneg %p138
        $region22: #{tpu_custom_call.1} parent=11 // pred_check_branch
          %266 = sbr.rel (%p264) target = $region24
        $region23: #{tpu_custom_call.1} parent=11 // pred_region
          %268 = vsyncadd [#allocation7], 0
          %s269 = sshll.u32 %s4, 4
          %s270 = int_to_ptr.hbm [resolvable:$true] %s269
          %s271 = sshll.u32 [#allocation8], 4
          %s272 = int_to_ptr.vmem [resolvable:$true] %s271
          %277 = dma.hbm_to_vmem [thread:$0]  %s270, 1024, %s272, [#allocation7], 64, 64, 4
        $region24: #{tpu_custom_call.1} parent=11 // pred_fallthru
          _
        // Predicated region
        $region25: #{tpu_custom_call.1} parent=11 // pred_check
          %p278 = pneg %p159
        $region26: #{tpu_custom_call.1} parent=11 // pred_check_branch
          %280 = sbr.rel (%p278) target = $region28
        $region27: #{tpu_custom_call.1} parent=11 // pred_region
          _
        $region28: #{tpu_custom_call.1} parent=11 // pred_fallthru
          _
        // Predicated region
        $region29: #{tpu_custom_call.1} parent=11 // pred_check
          %p281 = pneg %p180
        $region30: #{tpu_custom_call.1} parent=11 // pred_check_branch
          %283 = sbr.rel (%p281) target = $region32
        $region31: #{tpu_custom_call.1} parent=11 // pred_region
          _
        $region32: #{tpu_custom_call.1} parent=11 // pred_fallthru
          _
        // Predicated region
        $region33: #{tpu_custom_call.1} parent=11 // pred_check
          %p284 = pneg %p201
        $region34: #{tpu_custom_call.1} parent=11 // pred_check_branch
          %286 = sbr.rel (%p284) target = $region36
        $region35: #{tpu_custom_call.1} parent=11 // pred_region
          %288 = vsyncadd [#allocation10], 0
          %s289 = sshll.u32 %s7, 4
          %s290 = int_to_ptr.hbm [resolvable:$true] %s289
          %s291 = sshll.u32 [#allocation9], 4
          %s292 = int_to_ptr.vmem [resolvable:$true] %s291
          %297 = dma.hbm_to_vmem [thread:$0]  %s290, 1024, %s292, [#allocation10], 64, 64, 4
        $region36: #{tpu_custom_call.1} parent=11 // pred_fallthru
          _
        // Predicated region
        $region37: #{tpu_custom_call.1} parent=11 // pred_check
          %p298 = pneg %p222
        $region38: #{tpu_custom_call.1} parent=11 // pred_check_branch
          %300 = sbr.rel (%p298) target = $region40
        $region39: #{tpu_custom_call.1} parent=11 // pred_region
          _
        $region40: #{tpu_custom_call.1} parent=11 // pred_fallthru
          _
      $region12: #{tpu_custom_call.1} parent=5 // pred_fallthru
        _
      %p301 = scmp.lt.s32.totalorder %s23, 2
      // Predicated region
      $region41: #{tpu_custom_call.1} parent=5 // pred_check
        %p302 = pneg %p301
      $region42: #{tpu_custom_call.1} parent=5 // pred_check_branch
        %304 = sbr.rel (%p302) target = $region44
      $region43: #{tpu_custom_call.1} parent=5 // pred_region
        // Predicated region
        $region45: #{tpu_custom_call.1} parent=43 // pred_check
          %p305 = pneg %p43
        $region46: #{tpu_custom_call.1} parent=43 // pred_check_branch
          %307 = sbr.rel (%p305) target = $region48
        $region47: #{tpu_custom_call.1} parent=43 // pred_region
          %s308 = sand.u32 %s33, 1
          %s309 = scalar_lea.sflag [#allocation4], %s308
          %s310 = sand.u32 %s33, 1
          %s311 = smul.addr %s310, 8
          %s312 = scalar_lea.vmem [#allocation3], %s311
          %s313 = smul.u32 2, %s23
          %315 = vsyncadd %s309, 0
          %s316 = smul.addr %s313, 4
          %s317 = scalar_lea.hbm %s0, %s316
          %s319 = sshll.u32 %s317, 4
          %s320 = int_to_ptr.hbm [resolvable:$true] %s319
          %s321 = sshll.u32 %s312, 4
          %s322 = int_to_ptr.vmem [resolvable:$true] %s321
          %324 = dma.hbm_to_vmem [thread:$0]  %s320, 128, %s322, %s309
        $region48: #{tpu_custom_call.1} parent=43 // pred_fallthru
          _
        // Predicated region
        $region49: #{tpu_custom_call.1} parent=43 // pred_check
          %p325 = pneg %p69
        $region50: #{tpu_custom_call.1} parent=43 // pred_check_branch
          %327 = sbr.rel (%p325) target = $region52
        $region51: #{tpu_custom_call.1} parent=43 // pred_region
          %s328 = sand.u32 %s23, 1
          %s329 = scalar_lea.sflag [#allocation7], %s328
          %s330 = sand.u32 %s59, 1
          %s331 = smul.addr %s330, 128
          %s332 = scalar_lea.vmem [#allocation6], %s331
          %s333 = smul.u32 32, %s23
          %335 = vsyncadd %s329, 0
          %s336 = smul.addr %s333, 4
          %s337 = scalar_lea.hbm %s1, %s336
          %s338 = sshll.u32 %s337, 4
          %s339 = int_to_ptr.hbm [resolvable:$true] %s338
          %s340 = sshll.u32 %s332, 4
          %s341 = int_to_ptr.vmem [resolvable:$true] %s340
          %346 = dma.hbm_to_vmem [thread:$0]  %s339, 2048, %s341, %s329, 64, 64, 4
        $region52: #{tpu_custom_call.1} parent=43 // pred_fallthru
          _
      $region44: #{tpu_custom_call.1} parent=5 // pred_fallthru
        _
      %p347 = scmp.le.s32.totalorder 1, %s23
      %p348 = scmp.lt.s32.totalorder %s23, 3
      %p349 = pnand %p347, %p348
      %p350 = pneg %p349
      // Predicated region
      $region53: #{tpu_custom_call.1} parent=5 // pred_check
        _
      $region54: #{tpu_custom_call.1} parent=5 // pred_check_branch
        %352 = sbr.rel (%p349) target = $region56
      $region55: #{tpu_custom_call.1} parent=5 // pred_region
        %s353 = ssub.s32 %s23, 1
        %s354 = sand.u32 %s36, 1
        %s355 = scalar_lea.sflag [#allocation4], %s354
        %s356 = sand.u32 %s36, 1
        %s357 = smul.addr %s356, 8
        %s358 = scalar_lea.vmem [#allocation3], %s357
        // Predicated region
        $region57: #{tpu_custom_call.1} parent=55 // pred_check
          %p359 = pneg %p49
        $region58: #{tpu_custom_call.1} parent=55 // pred_check_branch
          %361 = sbr.rel (%p359) target = $region60
        $region59: #{tpu_custom_call.1} parent=55 // pred_region
          %363 = dma.done %s355, 128
        $region60: #{tpu_custom_call.1} parent=55 // pred_fallthru
          _
        %s364 = sand.u32 %s28, 1
        %s365 = scalar_lea.sflag [#allocation7], %s364
        %s366 = sand.u32 %s62, 1
        %s367 = smul.addr %s366, 128
        %s368 = scalar_lea.vmem [#allocation6], %s367
        // Predicated region
        $region61: #{tpu_custom_call.1} parent=55 // pred_check
          %p369 = pneg %p75
        $region62: #{tpu_custom_call.1} parent=55 // pred_check_branch
          %371 = sbr.rel (%p369) target = $region64
        $region63: #{tpu_custom_call.1} parent=55 // pred_region
          %373 = dma.done %s365, 2048
        $region64: #{tpu_custom_call.1} parent=55 // pred_fallthru
          _
        // Predicated region
        $region65: #{tpu_custom_call.1} parent=55 // pred_check
          %p374 = pneg %p138
        $region66: #{tpu_custom_call.1} parent=55 // pred_check_branch
          %376 = sbr.rel (%p374) target = $region68
        $region67: #{tpu_custom_call.1} parent=55 // pred_region
          %378 = dma.done [#allocation7], 1024
        $region68: #{tpu_custom_call.1} parent=55 // pred_fallthru
          _
        // Predicated region
        $region69: #{tpu_custom_call.1} parent=55 // pred_check
          %p379 = pneg %p201
        $region70: #{tpu_custom_call.1} parent=55 // pred_check_branch
          %381 = sbr.rel (%p379) target = $region72
        $region71: #{tpu_custom_call.1} parent=55 // pred_region
          %383 = dma.done [#allocation10], 1024
        $region72: #{tpu_custom_call.1} parent=55 // pred_fallthru
          _
        %s384 = sand.u32 %s36, 1
        %s385 = scalar_lea.sflag [#allocation4], %s384
        %s386 = sand.u32 %s36, 1
        %s387 = smul.addr %s386, 8
        %s388 = scalar_lea.vmem [#allocation3], %s387
        %p389 = pneg %p49
        %p390 = pneg %p46
        %s391 = sand.u32 %s28, 1
        %s392 = scalar_lea.sflag [#allocation7], %s391
        %s393 = sand.u32 %s62, 1
        %s394 = smul.addr %s393, 128
        %s395 = scalar_lea.vmem [#allocation6], %s394
        %p396 = pneg %p75
        %p397 = pneg %p72
        %p398 = pneg %p96
        %p399 = pneg %p93
        %p400 = pneg %p117
        %p401 = pneg %p114
        %p402 = pneg %p138
        %p403 = pneg %p135
        %p404 = pneg %p159
        %p405 = pneg %p156
        %p406 = pneg %p180
        %p407 = pneg %p177
        %p408 = pneg %p201
        %p409 = pneg %p198
        %p410 = pneg %p222
        %p411 = pneg %p219
        %p412 = pneg %p243
        %p413 = pneg %p240
        %s414 = smul.u32 2, %s28
        %s415 = smul.u32 32, %s28
        %p416 = scmp.eq.s32.totalorder %s28, 0
        // Predicated region
        $region73: #{tpu_custom_call.1} parent=55 // pred_check
          %p417 = pneg %p416
        $region74: #{tpu_custom_call.1} parent=55 // pred_check_branch
          %419 = sbr.rel (%p417) target = $region76
        $region75: #{tpu_custom_call.1} parent=55 // pred_region
          %420 = vst [vmem:[#allocation2] sm:$0xff] 0.0
        $region76: #{tpu_custom_call.1} parent=55 // pred_fallthru
          _
        %v421 = vld [vmem:[#allocation2] sm:$0xff]
        %v422 = vld [vmem:[%s358] sm:$0xff]
        %v423 = vld [vmem:[%s368] sm:$0xf]
        %v424 = vld [vmem:[%s368 + $0x4] sm:$0xf]
        %v425 = vld [vmem:[%s368 + $0x8] sm:$0xf]
        %v426 = vld [vmem:[%s368 + $0xc] sm:$0xf]
        %v427 = vld [vmem:[%s368 + $0x10] sm:$0xf]
        %v428 = vld [vmem:[%s368 + $0x14] sm:$0xf]
        %v429 = vld [vmem:[%s368 + $0x18] sm:$0xf]
        %v430 = vld [vmem:[%s368 + $0x1c] sm:$0xf]
        %v431 = vld [vmem:[%s368 + $0x20] sm:$0xf]
        %v432 = vld [vmem:[%s368 + $0x24] sm:$0xf]
        %v433 = vld [vmem:[%s368 + $0x28] sm:$0xf]
        %v434 = vld [vmem:[%s368 + $0x2c] sm:$0xf]
        %v435 = vld [vmem:[%s368 + $0x30] sm:$0xf]
        %v436 = vld [vmem:[%s368 + $0x34] sm:$0xf]
        %v437 = vld [vmem:[%s368 + $0x38] sm:$0xf]
        %v438 = vld [vmem:[%s368 + $0x3c] sm:$0xf]
        %v439 = vld [vmem:[%s368 + $0x40] sm:$0xf]
        %v440 = vld [vmem:[%s368 + $0x44] sm:$0xf]
        %v441 = vld [vmem:[%s368 + $0x48] sm:$0xf]
        %v442 = vld [vmem:[%s368 + $0x4c] sm:$0xf]
        %v443 = vld [vmem:[%s368 + $0x50] sm:$0xf]
        %v444 = vld [vmem:[%s368 + $0x54] sm:$0xf]
        %v445 = vld [vmem:[%s368 + $0x58] sm:$0xf]
        %v446 = vld [vmem:[%s368 + $0x5c] sm:$0xf]
        %v447 = vld [vmem:[%s368 + $0x60] sm:$0xf]
        %v448 = vld [vmem:[%s368 + $0x64] sm:$0xf]
        %v449 = vld [vmem:[%s368 + $0x68] sm:$0xf]
        %v450 = vld [vmem:[%s368 + $0x6c] sm:$0xf]
        %v451 = vld [vmem:[%s368 + $0x70] sm:$0xf]
        %v452 = vld [vmem:[%s368 + $0x74] sm:$0xf]
        %v453 = vld [vmem:[%s368 + $0x78] sm:$0xf]
        %v454 = vld [vmem:[%s368 + $0x7c] sm:$0xf]
        %v456 = vunpack.c.l.b16 %v422
        %v457 = vunpack.c.h.b16 %v422
        %v458 = vpack.c.b16 %v456, %v456
        %v459 = vpack.c.b16 %v457, %v457
        %v494 = vunpack.c.l.b16 %v423
        %v495 = vunpack.c.l.b16 %v424
        %v496 = vunpack.c.l.b16 %v425
        %v497 = vunpack.c.l.b16 %v426
        %v498 = vunpack.c.l.b16 %v427
        %v499 = vunpack.c.l.b16 %v428
        %v500 = vunpack.c.l.b16 %v429
        %v501 = vunpack.c.l.b16 %v430
        %v502 = vunpack.c.l.b16 %v431
        %v503 = vunpack.c.l.b16 %v432
        %v504 = vunpack.c.l.b16 %v433
        %v505 = vunpack.c.l.b16 %v434
        %v506 = vunpack.c.l.b16 %v435
        %v507 = vunpack.c.l.b16 %v436
        %v508 = vunpack.c.l.b16 %v437
        %v509 = vunpack.c.l.b16 %v438
        %v510 = vunpack.c.l.b16 %v439
        %v511 = vunpack.c.l.b16 %v440
        %v512 = vunpack.c.l.b16 %v441
        %v513 = vunpack.c.l.b16 %v442
        %v514 = vunpack.c.l.b16 %v443
        %v515 = vunpack.c.l.b16 %v444
        %v516 = vunpack.c.l.b16 %v445
        %v517 = vunpack.c.l.b16 %v446
        %v518 = vunpack.c.l.b16 %v447
        %v519 = vunpack.c.l.b16 %v448
        %v520 = vunpack.c.l.b16 %v449
        %v521 = vunpack.c.l.b16 %v450
        %v522 = vunpack.c.l.b16 %v451
        %v523 = vunpack.c.l.b16 %v452
        %v524 = vunpack.c.l.b16 %v453
        %v525 = vunpack.c.l.b16 %v454
        %v526 = vpack.c.b16 %v495, %v494
        %v527 = vpack.c.b16 %v497, %v496
        %v528 = vpack.c.b16 %v499, %v498
        %v529 = vpack.c.b16 %v501, %v500
        %v530 = vpack.c.b16 %v503, %v502
        %v531 = vpack.c.b16 %v505, %v504
        %v532 = vpack.c.b16 %v507, %v506
        %v533 = vpack.c.b16 %v509, %v508
        %v534 = vpack.c.b16 %v511, %v510
        %v535 = vpack.c.b16 %v513, %v512
        %v536 = vpack.c.b16 %v515, %v514
        %v537 = vpack.c.b16 %v517, %v516
        %v538 = vpack.c.b16 %v519, %v518
        %v539 = vpack.c.b16 %v521, %v520
        %v540 = vpack.c.b16 %v523, %v522
        %v541 = vpack.c.b16 %v525, %v524
        %558 = vmatpush.bf16.msra.mxu0 %v533
        %559 = vmatpush.bf16.msra.mxu0 %v532
        %560 = vmatpush.bf16.msra.mxu0 %v531
        %561 = vmatpush.bf16.msra.mxu0 %v530
        %562 = vmatpush.bf16.msra.mxu0 %v529
        %563 = vmatpush.bf16.msra.mxu0 %v528
        %564 = vmatpush.bf16.msra.mxu0 %v527
        %565 = vmatpush.bf16.msra.mxu0 %v526
        %566 = vmatmul.bf16.gmra.mxu0 %v458
        %v567 = vpop.f32.mrf.mxu0
        %v568 = vadd.f32 0.0, %v567
        %v569 = vpop.f32.mrf.mxu0
        %570 = vdwg.mxu0
        %571 = vmatpush.bf16.msra.mxu0 %v541
        %572 = vmatpush.bf16.msra.mxu0 %v540
        %573 = vmatpush.bf16.msra.mxu0 %v539
        %574 = vmatpush.bf16.msra.mxu0 %v538
        %575 = vmatpush.bf16.msra.mxu0 %v537
        %576 = vmatpush.bf16.msra.mxu0 %v536
        %577 = vmatpush.bf16.msra.mxu0 %v535
        %578 = vmatpush.bf16.msra.mxu0 %v534
        %579 = vmatmul.bf16.gmra.mxu0 %v459
        %v580 = vpop.f32.mrf.mxu0
        %v581 = vadd.f32 %v568, %v580
        %v582 = vpop.f32.mrf.mxu0
        %583 = vdwg.mxu0
        %v584 = vadd.f32 %v421, %v581
        %585 = vst [vmem:[#allocation2] sm:$0xff] %v584
        %p586 = scmp.eq.s32.totalorder %s28, 1
        // Predicated region
        $region77: #{tpu_custom_call.1} parent=55 // pred_check
          %p587 = pneg %p586
        $region78: #{tpu_custom_call.1} parent=55 // pred_check_branch
          %589 = sbr.rel (%p587) target = $region80
        $region79: #{tpu_custom_call.1} parent=55 // pred_region
          %v590 = vld [vmem:[#allocation2] sm:$0xff]
          %v591 = vld [vmem:[%s2] sm:$0x1]
          %v592 = vld [vmem:[%s3] sm:$0x1]
          %v593 = vrot.slane %v590, 4
          %v594 = vadd.f32 %v590, %v593
          %v595 = vrot.slane %v594, 2
          %v596 = vadd.f32 %v594, %v595
          %v597 = vrot.slane %v596, 1
          %v598 = vadd.f32 %v596, %v597
          %v599 = vrcp.pop 8.0
          %v600 = vmul.f32 8.0, %v599
          %v601 = vsub.f32 1.0, %v600
          %v602 = vmul.f32 %v599, %v601
          %v603 = vadd.f32 %v599, %v602
          %vm604 = vweird.f32 %v599
          %v605 = vsel %vm604, %v599, %v603
          %v606 = vmul.f32 %v598, %v605
          %v607 = vsub.f32 %v590, %v606
          %v608 = vmul.f32 %v607, %v607
          %v609 = vrot.slane %v608, 4
          %v610 = vadd.f32 %v608, %v609
          %v611 = vrot.slane %v610, 2
          %v612 = vadd.f32 %v610, %v611
          %v613 = vrot.slane %v612, 1
          %v614 = vadd.f32 %v612, %v613
          %v615 = vmul.f32 %v614, %v605
          %v616 = vadd.f32 %v615, 1e-05
          %v617 = vrsqrt.pop %v616
          %v618 = vmul.f32 %v617, %v616
          %v619 = vmul.f32 %v618, %v617
          %v620 = vmul.f32 0.5, %v619
          %v621 = vsub.f32 1.5, %v620
          %v622 = vmul.f32 %v617, %v621
          %vm623 = vweird.f32 %v616
          %vm624 = vweird.f32 %v617
          %vm625 = vmor %vm623, %vm624
          %v626 = vsel %vm625, %v617, %v622
          %v627 = vmul.f32 %v607, %v626
          %v629 = vperm.slane %v591, 0
          %v631 = vmul.f32 %v627, %v629
          %v633 = vperm.slane %v592, 0
          %v635 = vadd.f32 %v631, %v633
          %v636 = vand.u32 2147483647, %v635
          %v637 = vadd.f32 %v636, 1.0
          %v638 = vrcp.pop %v637
          %v639 = vmul.f32 %v637, %v638
          %v640 = vsub.f32 1.0, %v639
          %v641 = vmul.f32 %v638, %v640
          %v642 = vadd.f32 %v638, %v641
          %vm643 = vweird.f32 %v637
          %vm644 = vweird.f32 %v638
          %vm645 = vmor %vm643, %vm644
          %v646 = vsel %vm645, %v638, %v642
          %v647 = vand.u32 2147483647, %v637
          %vm648 = vcmp.eq.f32.partialorder %v647, 8.507059e+37
          %v649 = vand.u32 %v637, 2147483648
          %v650 = vor.u32 1.1754944e-38, %v649
          %v651 = vsel %vm648, %v650, %v646
          %v652 = vmul.f32 %v635, %v651
          %v653 = vpack.c.bf16 %v652, %v652
          %v654 = vld [vmem:[#allocation8] sm:$0xf]
          %v655 = vld [vmem:[#allocation8 + $0x4] sm:$0xf]
          %v656 = vld [vmem:[#allocation8 + $0x8] sm:$0xf]
          %v657 = vld [vmem:[#allocation8 + $0xc] sm:$0xf]
          %v658 = vld [vmem:[#allocation8 + $0x10] sm:$0xf]
          %v659 = vld [vmem:[#allocation8 + $0x14] sm:$0xf]
          %v660 = vld [vmem:[#allocation8 + $0x18] sm:$0xf]
          %v661 = vld [vmem:[#allocation8 + $0x1c] sm:$0xf]
          %v662 = vld [vmem:[#allocation8 + $0x20] sm:$0xf]
          %v663 = vld [vmem:[#allocation8 + $0x24] sm:$0xf]
          %v664 = vld [vmem:[#allocation8 + $0x28] sm:$0xf]
          %v665 = vld [vmem:[#allocation8 + $0x2c] sm:$0xf]
          %v666 = vld [vmem:[#allocation8 + $0x30] sm:$0xf]
          %v667 = vld [vmem:[#allocation8 + $0x34] sm:$0xf]
          %v668 = vld [vmem:[#allocation8 + $0x38] sm:$0xf]
          %v669 = vld [vmem:[#allocation8 + $0x3c] sm:$0xf]
          %v686 = vunpack.c.l.b16 %v654
          %v687 = vunpack.c.l.b16 %v655
          %v688 = vunpack.c.l.b16 %v656
          %v689 = vunpack.c.l.b16 %v657
          %v690 = vunpack.c.l.b16 %v658
          %v691 = vunpack.c.l.b16 %v659
          %v692 = vunpack.c.l.b16 %v660
          %v693 = vunpack.c.l.b16 %v661
          %v694 = vunpack.c.l.b16 %v662
          %v695 = vunpack.c.l.b16 %v663
          %v696 = vunpack.c.l.b16 %v664
          %v697 = vunpack.c.l.b16 %v665
          %v698 = vunpack.c.l.b16 %v666
          %v699 = vunpack.c.l.b16 %v667
          %v700 = vunpack.c.l.b16 %v668
          %v701 = vunpack.c.l.b16 %v669
          %v702 = vpack.c.b16 %v687, %v686
          %v703 = vpack.c.b16 %v689, %v688
          %v704 = vpack.c.b16 %v691, %v690
          %v705 = vpack.c.b16 %v693, %v692
          %v706 = vpack.c.b16 %v695, %v694
          %v707 = vpack.c.b16 %v697, %v696
          %v708 = vpack.c.b16 %v699, %v698
          %v709 = vpack.c.b16 %v701, %v700
          %718 = vmatpush.bf16.msra.mxu0 %v709
          %719 = vmatpush.bf16.msra.mxu0 %v708
          %720 = vmatpush.bf16.msra.mxu0 %v707
          %721 = vmatpush.bf16.msra.mxu0 %v706
          %722 = vmatpush.bf16.msra.mxu0 %v705
          %723 = vmatpush.bf16.msra.mxu0 %v704
          %724 = vmatpush.bf16.msra.mxu0 %v703
          %725 = vmatpush.bf16.msra.mxu0 %v702
          %726 = vmatmul.bf16.gmra.mxu0 %v653
          %v727 = vpop.f32.mrf.mxu0
          %v728 = vadd.f32 0.0, %v727
          %v729 = vpop.f32.mrf.mxu0
          %730 = vdwg.mxu0
          %v731 = vld [vmem:[%s5] sm:$0x1]
          %v732 = vld [vmem:[%s6] sm:$0x1]
          %v733 = vrot.slane %v728, 4
          %v734 = vadd.f32 %v728, %v733
          %v735 = vrot.slane %v734, 2
          %v736 = vadd.f32 %v734, %v735
          %v737 = vrot.slane %v736, 1
          %v738 = vadd.f32 %v736, %v737
          %v739 = vmul.f32 %v738, %v605
          %v740 = vsub.f32 %v728, %v739
          %v741 = vmul.f32 %v740, %v740
          %v742 = vrot.slane %v741, 4
          %v743 = vadd.f32 %v741, %v742
          %v744 = vrot.slane %v743, 2
          %v745 = vadd.f32 %v743, %v744
          %v746 = vrot.slane %v745, 1
          %v747 = vadd.f32 %v745, %v746
          %v748 = vmul.f32 %v747, %v605
          %v749 = vadd.f32 %v748, 1e-05
          %v750 = vrsqrt.pop %v749
          %v751 = vmul.f32 %v750, %v749
          %v752 = vmul.f32 %v751, %v750
          %v753 = vmul.f32 0.5, %v752
          %v754 = vsub.f32 1.5, %v753
          %v755 = vmul.f32 %v750, %v754
          %vm756 = vweird.f32 %v749
          %vm757 = vweird.f32 %v750
          %vm758 = vmor %vm756, %vm757
          %v759 = vsel %vm758, %v750, %v755
          %v760 = vmul.f32 %v740, %v759
          %v762 = vperm.slane %v731, 0
          %v764 = vmul.f32 %v760, %v762
          %v766 = vperm.slane %v732, 0
          %v768 = vadd.f32 %v764, %v766
          %v769 = vand.u32 2147483647, %v768
          %v770 = vadd.f32 %v769, 1.0
          %v771 = vrcp.pop %v770
          %v772 = vmul.f32 %v770, %v771
          %v773 = vsub.f32 1.0, %v772
          %v774 = vmul.f32 %v771, %v773
          %v775 = vadd.f32 %v771, %v774
          %vm776 = vweird.f32 %v770
          %vm777 = vweird.f32 %v771
          %vm778 = vmor %vm776, %vm777
          %v779 = vsel %vm778, %v771, %v775
          %v780 = vand.u32 2147483647, %v770
          %vm781 = vcmp.eq.f32.partialorder %v780, 8.507059e+37
          %v782 = vand.u32 %v770, 2147483648
          %v783 = vor.u32 1.1754944e-38, %v782
          %v784 = vsel %vm781, %v783, %v779
          %v785 = vmul.f32 %v768, %v784
          %v786 = vpack.c.bf16 %v785, %v785
          %v787 = vld [vmem:[#allocation9] sm:$0xf]
          %v788 = vld [vmem:[#allocation9 + $0x4] sm:$0xf]
          %v789 = vld [vmem:[#allocation9 + $0x8] sm:$0xf]
          %v790 = vld [vmem:[#allocation9 + $0xc] sm:$0xf]
          %v791 = vld [vmem:[#allocation9 + $0x10] sm:$0xf]
          %v792 = vld [vmem:[#allocation9 + $0x14] sm:$0xf]
          %v793 = vld [vmem:[#allocation9 + $0x18] sm:$0xf]
          %v794 = vld [vmem:[#allocation9 + $0x1c] sm:$0xf]
          %v795 = vld [vmem:[#allocation9 + $0x20] sm:$0xf]
          %v796 = vld [vmem:[#allocation9 + $0x24] sm:$0xf]
          %v797 = vld [vmem:[#allocation9 + $0x28] sm:$0xf]
          %v798 = vld [vmem:[#allocation9 + $0x2c] sm:$0xf]
          %v799 = vld [vmem:[#allocation9 + $0x30] sm:$0xf]
          %v800 = vld [vmem:[#allocation9 + $0x34] sm:$0xf]
          %v801 = vld [vmem:[#allocation9 + $0x38] sm:$0xf]
          %v802 = vld [vmem:[#allocation9 + $0x3c] sm:$0xf]
          %v803 = vld [vmem:[%s8] sm:$0x1]
          %v805 = vperm.slane %v803, 0
          %v823 = vunpack.c.l.b16 %v787
          %v824 = vunpack.c.l.b16 %v788
          %v825 = vunpack.c.l.b16 %v789
          %v826 = vunpack.c.l.b16 %v790
          %v827 = vunpack.c.l.b16 %v791
          %v828 = vunpack.c.l.b16 %v792
          %v829 = vunpack.c.l.b16 %v793
          %v830 = vunpack.c.l.b16 %v794
          %v831 = vunpack.c.l.b16 %v795
          %v832 = vunpack.c.l.b16 %v796
          %v833 = vunpack.c.l.b16 %v797
          %v834 = vunpack.c.l.b16 %v798
          %v835 = vunpack.c.l.b16 %v799
          %v836 = vunpack.c.l.b16 %v800
          %v837 = vunpack.c.l.b16 %v801
          %v838 = vunpack.c.l.b16 %v802
          %v839 = vpack.c.b16 %v824, %v823
          %v840 = vpack.c.b16 %v826, %v825
          %v841 = vpack.c.b16 %v828, %v827
          %v842 = vpack.c.b16 %v830, %v829
          %v843 = vpack.c.b16 %v832, %v831
          %v844 = vpack.c.b16 %v834, %v833
          %v845 = vpack.c.b16 %v836, %v835
          %v846 = vpack.c.b16 %v838, %v837
          %855 = vmatpush.bf16.msra.mxu0 %v846
          %856 = vmatpush.bf16.msra.mxu0 %v845
          %857 = vmatpush.bf16.msra.mxu0 %v844
          %858 = vmatpush.bf16.msra.mxu0 %v843
          %859 = vmatpush.bf16.msra.mxu0 %v842
          %860 = vmatpush.bf16.msra.mxu0 %v841
          %861 = vmatpush.bf16.msra.mxu0 %v840
          %862 = vmatpush.bf16.msra.mxu0 %v839
          %863 = vmatmul.bf16.gmra.mxu0 %v786
          %v864 = vpop.f32.mrf.mxu0
          %v865 = vadd.f32 %v805, %v864
          %v866 = vpop.f32.mrf.mxu0
          %867 = vdwg.mxu0
          %868 = vst [vmem:[#allocation11] sm:$0xff] %v865
        $region80: #{tpu_custom_call.1} parent=55 // pred_fallthru
          _
        // Predicated region
        $region81: #{tpu_custom_call.1} parent=55 // pred_check
          %p869 = pneg %p240
        $region82: #{tpu_custom_call.1} parent=55 // pred_check_branch
          %871 = sbr.rel (%p869) target = $region84
        $region83: #{tpu_custom_call.1} parent=55 // pred_region
          %873 = vsyncadd [#allocation5], 0
          %s875 = sshll.u32 [#allocation11], 4
          %s876 = int_to_ptr.vmem [resolvable:$true] %s875
          %s877 = sshll.u32 %s9, 4
          %s878 = int_to_ptr.hbm [resolvable:$true] %s877
          %880 = dma.vmem_to_hbm [thread:$0]  %s876, 128, %s878, [#allocation5]
        $region84: #{tpu_custom_call.1} parent=55 // pred_fallthru
          _
        // Predicated region
        $region85: #{tpu_custom_call.1} parent=55 // pred_check
          %p881 = pneg %p240
        $region86: #{tpu_custom_call.1} parent=55 // pred_check_branch
          %883 = sbr.rel (%p881) target = $region88
        $region87: #{tpu_custom_call.1} parent=55 // pred_region
          %885 = dma.done [#allocation5], 128
        $region88: #{tpu_custom_call.1} parent=55 // pred_fallthru
          _
      $region56: #{tpu_custom_call.1} parent=5 // pred_fallthru
        _
      %p886 = scmp.le.s32.totalorder 2, %s23
      // Predicated region
      $region89: #{tpu_custom_call.1} parent=5 // pred_check
        %p887 = pneg %p886
      $region90: #{tpu_custom_call.1} parent=5 // pred_check_branch
        %889 = sbr.rel (%p887) target = $region92
      $region91: #{tpu_custom_call.1} parent=5 // pred_region
        %s890 = ssub.s32 %s23, 2
      $region92: #{tpu_custom_call.1} parent=5 // pred_fallthru
        _
    $region6: #{tpu_custom_call.1} parent=1 // loop_footer
      %s27 = sadd.s32 1, %s23
    $region7: #{tpu_custom_call.1} parent=1 // loop_footer_branch
      %22 = sbr.rel target = $region3
    $region8: #{tpu_custom_call.1} parent=1 // loop_exit
      _
    %891 = vsyncpa [#allocation4], 1
    %s892 = scalar_lea.sflag [#allocation4], 1
    %893 = vsyncpa %s892, 1
    %894 = vsyncpa [#allocation7], 1
    %s895 = scalar_lea.sflag [#allocation7], 1
    %896 = vsyncpa %s895, 1
    %897 = vsyncpa [#allocation10], 1
    %898 = vsyncpa [#allocation5], 1
    %s899 = scalar_lea.sflag [#allocation5], 1
    %900 = vsyncpa %s899, 1

</llo_original>
